<compile_context>
chip_gen: v7x
topology: tpu7x:2x2x1
jax: 0.10.0
libtpu: 0.0.40
codegen_flags: <defaults>
</compile_context>

<pallas_src>
import functools

import numpy as np
import jax
import jax.numpy as jnp
from jax import lax
from jax.experimental import pallas as pl
from jax.experimental.pallas import tpu as pltpu

EPS = 1e-5  # nn.LayerNorm default eps


# ----------------------------- small helpers ----------------------------------
def _round_up(x, m):
    return ((x + m - 1) // m) * m


def _flat3(x):
    """Flatten the trailing 3 (non-frozen) dims row-major, keep leading dims."""
    return x.reshape(x.shape[:-3] + (x.shape[-3] * x.shape[-2] * x.shape[-1],))


def _ln(x, gamma, beta):
    """LayerNorm over the last axis (biased variance, torch semantics). Reference only."""
    mu = jnp.mean(x, axis=-1, keepdims=True)
    var = jnp.mean((x - mu) ** 2, axis=-1, keepdims=True)
    return (x - mu) * lax.rsqrt(var + EPS) * gamma + beta


def _vmem_cap_bytes():
    """Physical VMEM of the current chip (generation-aware); conservative fallback = 64 MiB."""
    try:
        info = pltpu.get_tpu_info()
        cap = int(getattr(info, "vmem_capacity_bytes", 0))
        if cap > 0:
            return cap
    except Exception:
        pass
    return 64 << 20


def _vmem_budget(tm, k, gn):
    """Scoped-VMEM budget for the row-tiled TCL kernel: double-buffered activation/output tiles
    (f32) + one bf16 weight copy + affine rows + compiler headroom, capped at 7/8 of physical.
    TODO(synk): for very large K*GN weights, tile GN with a second grid axis instead of relying
    on the cap."""
    need = 4 * (2 * tm * k + 2 * tm * gn) + 2 * k * gn + 4 * 4 * gn + (4 << 20)
    cap = _vmem_cap_bytes()
    return int(min(max(need, 16 << 20), (cap * 7) // 8))


# ----------------------------- Pallas kernels ----------------------------------
def tcl_group_kernel(x_ref, wf_ref, bf_ref, gout_ref, bout_ref, o_ref, *,
                     n_pad, inv_k, inv_n, relu):
    """G fused TCL blocks sharing one input tile.

    norm_in's affine and the low-rank bias are already folded into wf/bf, so the kernel is:
      normalize(x) -> x_hat @ Wf + bf -> per-group norm_out (own gamma/beta) [-> relu].
    Padded lanes (input and per-group output) are exactly 0, so LN statistics use plain
    sums with 1/real_width and E[x^2] - mu^2 for the variance.
    """
    x = x_ref[...].astype(jnp.float32)
    mu = jnp.sum(x, axis=-1, keepdims=True) * inv_k
    var = jnp.sum(x * x, axis=-1, keepdims=True) * inv_k - mu * mu
    xn = (x - mu) * lax.rsqrt(var + EPS)

    # single MXU pass over all G fused (lane-padded) output blocks; bf16 weights stored as bf16.
    y = jnp.dot(xn.astype(jnp.bfloat16), wf_ref[...],
                preferred_element_type=jnp.float32) + bf_ref[...]

    n_groups = y.shape[-1] // n_pad
    for g in range(n_groups):                      # static unroll (G is 1 or 3)
        lo, hi = g * n_pad, (g + 1) * n_pad        # 128-aligned, unmasked slices/stores
        yg = y[:, lo:hi]
        mu_g = jnp.sum(yg, axis=-1, keepdims=True) * inv_n
        var_g = jnp.sum(yg * yg, axis=-1, keepdims=True) * inv_n - mu_g * mu_g
        yn = (yg - mu_g) * lax.rsqrt(var_g + EPS)
        yn = yn * gout_ref[:, lo:hi] + bout_ref[:, lo:hi]   # padded lanes: gamma=beta=0 -> 0
        if relu:
            yn = jnp.maximum(yn, 0.0)
        o_ref[:, lo:hi] = yn.astype(o_ref.dtype)


def tcl_group_apply(x, fused, relu=False):
    """Apply a fused TCL group to x: (..., K_pad) -> (..., G*n_pad). Row-tiled, pipelined.
    The returned array keeps the lane padding (exact zeros) so chained TCL/GRU kernels can
    consume it directly; slice [..., :n_out] only when the real width is needed."""
    wf = fused["Wf"]
    K, GN = wf.shape
    lead = x.shape[:-1]
    assert x.shape[-1] == K, (x.shape, K)
    M = int(np.prod(lead)) if lead else 1
    x2 = x.reshape(M, K)

    # Row tile: multiple of 8, <= 512 rows, sized so the grid has >= 2 steps when possible
    # (v7x megacore: "parallel" rows split across the two TensorCores).  No wrapper padding:
    # the tail block is masked by Pallas and rows are independent.
    TM = min(512, max(8, _round_up(pl.cdiv(M, 2), 8)))
    grid = (pl.cdiv(M, TM),)

    out = pl.pallas_call(
        functools.partial(tcl_group_kernel, n_pad=fused["n_pad"],
                          inv_k=1.0 / fused["k_real"], inv_n=1.0 / fused["n_out"],
                          relu=relu),
        grid=grid,
        in_specs=[
            pl.BlockSpec((TM, K), lambda i: (i, 0)),   # activation row tile
            pl.BlockSpec((K, GN), lambda i: (0, 0)),   # fused bf16 weight (grid-invariant)
            pl.BlockSpec((1, GN), lambda i: (0, 0)),   # fused bias
            pl.BlockSpec((1, GN), lambda i: (0, 0)),   # norm_out gamma (all groups, 0 in padding)
            pl.BlockSpec((1, GN), lambda i: (0, 0)),   # norm_out beta  (all groups, 0 in padding)
        ],
        out_specs=pl.BlockSpec((TM, GN), lambda i: (i, 0)),
        out_shape=jax.ShapeDtypeStruct((M, GN), jnp.float32),
        compiler_params=pltpu.CompilerParams(
            dimension_semantics=("parallel",),
            vmem_limit_bytes=_vmem_budget(TM, K, GN)),
    )(x2, wf, fused["bf"], fused["gout"], fused["bout"])

    return out.reshape(lead + (GN,))


def gru_kernel(xw_ref, h0_ref, wu_ref, bu_ref, gu_ref, bo_ref, *out_refs,
               n_pad, inv_h, return_sequence):
    """custom_GRU_TL recurrence in ONE invocation.

    xw_ref: (L, N, 3*Hp) precomputed, lane-padded W-path (fused linear_w already applied).
    The three U-gate TCLs are folded+fused into one (Hp, 3*Hp) bf16 matmul per step.  The
    sequence output (if requested) is a lane-dense (N, L*Hp) slab written with 128-aligned,
    unmasked stores.  Padded hidden lanes stay exactly 0 for the whole recurrence.
    """
    if return_sequence:
        out_ref, hlast_ref = out_refs
    else:
        (hlast_ref,) = out_refs
    Hp = n_pad
    L = xw_ref.shape[0]

    # hoisted loop-invariants (emitted once)
    wu = wu_ref[...]                                            # fused, folded (Hp, 3Hp) bf16
    bu = bu_ref[...]                                            # (1, 3Hp) folded bias
    gouts = [gu_ref[:, g * Hp:(g + 1) * Hp] for g in range(3)]
    bouts = [bo_ref[:, g * Hp:(g + 1) * Hp] for g in range(3)]

    h = h0_ref[...].astype(jnp.float32)

    # TODO(synk): for long L switch this static unroll to lax.fori_loop/pl.loop with pl.ds
    #             output writes and stream xw from HBM (memory_space=pl.ANY + make_async_copy);
    #             L is tiny/static here so the unrolled form keeps indices static.
    for t in range(L):
        # shared normalized h (norm_in affines folded into wu/bu); padded lanes of h are 0.
        mu = jnp.sum(h, axis=-1, keepdims=True) * inv_h
        var = jnp.sum(h * h, axis=-1, keepdims=True) * inv_h - mu * mu
        hn = (h - mu) * lax.rsqrt(var + EPS)

        y = jnp.dot(hn.astype(jnp.bfloat16), wu, preferred_element_type=jnp.float32) + bu

        gates = []
        for g in range(3):                                      # per-gate norm_out
            yg = y[:, g * Hp:(g + 1) * Hp]
            mg = jnp.sum(yg, axis=-1, keepdims=True) * inv_h
            vg = jnp.sum(yg * yg, axis=-1, keepdims=True) * inv_h - mg * mg
            gates.append((yg - mg) * lax.rsqrt(vg + EPS) * gouts[g] + bouts[g])
        h_z, h_r, h_h = gates

        x_t = xw_ref[t]                                          # (N, 3Hp), static index
        x_z, x_r, x_h = x_t[:, :Hp], x_t[:, Hp:2 * Hp], x_t[:, 2 * Hp:3 * Hp]

        z = jax.nn.sigmoid(x_z + h_z)
        r = jax.nn.sigmoid(x_r + h_r)
        h_hat = jnp.tanh(x_h + r * h_h)
        h = z * h + (1.0 - z) * h_hat                            # padded lanes stay exactly 0

        if return_sequence:
            out_ref[:, t * Hp:(t + 1) * Hp] = h.astype(out_ref.dtype)   # lane-dense slab

    hlast_ref[...] = h.astype(hlast_ref.dtype)                   # written once


def gru_apply(inputs, h0, w_fused, u_fused, return_sequence=True):
    """inputs: (L, N, E_pad) -> (outputs (N, L, Hp) batch-major or None, h_last (N, Hp))."""
    L, N, _ = inputs.shape
    Hp = u_fused["n_pad"]
    assert u_fused["Wf"].shape[1] == 3 * Hp
    if h0 is None:
        h0 = jnp.zeros((N, Hp), jnp.float32)

    # time-independent W-path: ONE fused TCL call producing x_z|x_r|x_h, shape (L, N, 3Hp)
    xw = tcl_group_apply(inputs, w_fused)

    if return_sequence:
        out_shape = (jax.ShapeDtypeStruct((N, L * Hp), jnp.float32),
                     jax.ShapeDtypeStruct((N, Hp), jnp.float32))
    else:
        out_shape = jax.ShapeDtypeStruct((N, Hp), jnp.float32)

    cap = _vmem_cap_bytes()
    need = (4 * (L * N * 3 * Hp + (N * L * Hp if return_sequence else 0) + 6 * N * Hp)
            + 2 * Hp * 3 * Hp + 16 * 3 * Hp + (4 << 20))
    vmem = int(min(max(need, 16 << 20), (cap * 7) // 8))

    res = pl.pallas_call(
        functools.partial(gru_kernel, n_pad=Hp, inv_h=1.0 / u_fused["n_out"],
                          return_sequence=return_sequence),
        out_shape=out_shape,
        compiler_params=pltpu.CompilerParams(vmem_limit_bytes=vmem),
    )(xw, h0, u_fused["Wf"], u_fused["bf"], u_fused["gout"], u_fused["bout"])

    if return_sequence:
        out_flat, h_last = res
        return out_flat.reshape(N, L, Hp), h_last        # batch-major, no transpose
    return None, res


# ----------------------------- pure-JAX reference -------------------------------
def tcl_ref(x, p, relu=False):
    """Unfused TCL forward (f32, HIGHEST precision) = module semantics ground truth."""
    xn = _ln(x, p["gin"], p["bin"])
    y = jnp.einsum("...k,kn->...n", xn, p["W"],
                   precision=lax.Precision.HIGHEST) + p["bias"]
    yn = _ln(y, p["gout"], p["bout"])
    return jnp.maximum(yn, 0.0) if relu else yn


def gru_ref(inputs, h0, w_params, u_params, return_sequence=True):
    L, N, _ = inputs.shape
    H = int(u_params[0]["W"].shape[1])
    h = jnp.zeros((N, H), jnp.float32) if h0 is None else h0
    outs = []
    for t in range(L):
        x_t = inputs[t]
        xz, xr, xh = [tcl_ref(x_t, p) for p in w_params]
        hz, hr, hh = [tcl_ref(h, p) for p in u_params]
        z = jax.nn.sigmoid(xz + hz)
        r = jax.nn.sigmoid(xr + hr)
        h_hat = jnp.tanh(xh + r * hh)
        h = z * h + (1.0 - z) * h_hat
        outs.append(h)
    if return_sequence:
        return jnp.stack(outs, axis=1), h                # batch-major (N, L, H)
    return None, h


# ----------------------------- network forward ----------------------------------
def netg_forward(params, X_p, X_f, noise, data_dim, tcl_fn, gru_fn):
    B, T = X_p.shape[:2]
    D = int(np.prod(data_dim))
    Xp = _flat3(X_p)                                     # (B, T, D)
    Xf = _flat3(X_f)
    nz = _flat3(noise)                                   # (B, H)

    # ONE fused fc pass over both X_p and X_f (one pallas_call, one weight fetch, 2x rows).
    E_pf = tcl_fn(jnp.concatenate([Xp, Xf], axis=0), params["fc"], relu=True)
    Xp_e = jnp.swapaxes(E_pf[:B], 0, 1)                  # (T, B, Ep) time-major for the GRU
    Xf_e = jnp.swapaxes(E_pf[B:], 0, 1)

    # encoder: only h_t is needed -> no sequence output slab
    _, h_t = gru_fn(Xp_e, None, params["enc_w"], params["enc_u"], return_sequence=False)

    nz_p = jnp.pad(nz, ((0, 0), (0, h_t.shape[-1] - nz.shape[-1])))   # match (lane-padded) width
    Xf_shft = jnp.concatenate([jnp.zeros_like(Xf_e[:1]), Xf_e[:-1]], axis=0)
    Yf, _ = gru_fn(Xf_shft, h_t + nz_p, params["dec_w"], params["dec_u"])   # (B, T, Hp)

    out = tcl_fn(Yf, params["fc_out"], relu=False)[..., :D]   # strip lane padding (no-op for ref)
    return out.reshape((B, T) + data_dim)


# ----------------------------- parameters ---------------------------------------
def make_tcl_params(key, in3, out3, bias_rank=1):
    """Raw TCL parameters: per-mode factors, LN affines, rank-R bias vectors (kron-expanded)."""
    ks = jax.random.split(key, 10)
    f = [jax.random.normal(ks[i], (in3[i], out3[i]), jnp.float32) for i in range(3)]
    W = jnp.kron(f[0], jnp.kron(f[1], f[2]))                     # fused Tucker operator
    Kin, Kout = int(np.prod(in3)), int(np.prod(out3))
    # Randomized LN affines (instead of torch's ones/zeros init) so the affine-fold is exercised.
    gin = 1.0 + 0.1 * jax.random.normal(ks[3], (Kin,), jnp.float32)
    bin_ = 0.1 * jax.random.normal(ks[4], (Kin,), jnp.float32)
    gout = 1.0 + 0.1 * jax.random.normal(ks[5], (Kout,), jnp.float32)
    bout = 0.1 * jax.random.normal(ks[6], (Kout,), jnp.float32)
    if bias_rank > 0:
        bvs = [jax.random.normal(ks[7 + j], (bias_rank, out3[j]), jnp.float32)
               for j in range(3)]
        bias_full = jnp.zeros((Kout,), jnp.float32)
        for r in range(bias_rank):                               # sum of kron outer products
            bias_full = bias_full + jnp.kron(bvs[0][r], jnp.kron(bvs[1][r], bvs[2][r]))
    else:
        bias_full = jnp.zeros((Kout,), jnp.float32)
    return dict(W=W, gin=gin, bin=bin_, gout=gout, bout=bout, bias=bias_full)


def fuse_tcl_group(plist, k_pad=None):
    """Fold norm_in affine + bias into the weights, zero-pad every output group to a multiple of
    128 lanes (gamma=beta=0 in the padding so padded lanes are exact zeros), zero-pad the input
    rows to `k_pad` (the lane-padded width of the producing kernel), concatenate the G TCLs along
    the output dim, and store the weight in bf16."""
    k_real = int(plist[0]["W"].shape[0])
    n_out = int(plist[0]["W"].shape[1])
    n_pad = _round_up(n_out, 128)
    if k_pad is None:
        k_pad = k_real
    Wfs, bfs, gouts, bouts = [], [], [], []
    for p in plist:
        W = p["gin"][:, None] * p["W"]                           # fold norm_in gamma
        b = p["bin"] @ p["W"] + p["bias"]                        # fold norm_in beta + kron bias
        Wfs.append(jnp.pad(W, ((0, k_pad - k_real), (0, n_pad - n_out))))
        bfs.append(jnp.pad(b, (0, n_pad - n_out)))
        gouts.append(jnp.pad(p["gout"], (0, n_pad - n_out)))     # gamma = 0 in padded lanes
        bouts.append(jnp.pad(p["bout"], (0, n_pad - n_out)))     # beta  = 0 in padded lanes
    Wf = jnp.concatenate(Wfs, axis=1).astype(jnp.bfloat16)       # bf16 at setup time
    bf = jnp.concatenate(bfs)[None, :]
    gout = jnp.concatenate(gouts)[None, :]
    bout = jnp.concatenate(bouts)[None, :]
    return dict(Wf=Wf, bf=bf, gout=gout, bout=bout,
                n_out=n_out, n_pad=n_pad, k_real=k_real, k_pad=k_pad)


# ----------------------------- test harness -------------------------------------
if __name__ == "__main__":
    B, T = 2, 4
    DATA_DIM = (2, 2, 8)
    EMB_DIM = (2, 2, 8)
    HID_DIM = (2, 2, 8)

    key = jax.random.PRNGKey(0)
    keys = jax.random.split(key, 32)

    raw = {
        "fc": make_tcl_params(keys[0], DATA_DIM, EMB_DIM),
        "fc_out": make_tcl_params(keys[1], HID_DIM, DATA_DIM),
        "enc_w": [make_tcl_params(keys[2 + i], EMB_DIM, HID_DIM) for i in range(3)],
        "enc_u": [make_tcl_params(keys[5 + i], HID_DIM, HID_DIM) for i in range(3)],
        "dec_w": [make_tcl_params(keys[8 + i], EMB_DIM, HID_DIM) for i in range(3)],
        "dec_u": [make_tcl_params(keys[11 + i], HID_DIM, HID_DIM) for i in range(3)],
    }
    fused = {}
    fused["fc"] = fuse_tcl_group([raw["fc"]])                    # raw data input (no K pad)
    Ep = fused["fc"]["n_pad"]                                    # lane-padded embedding width
    fused["enc_w"] = fuse_tcl_group(raw["enc_w"], k_pad=Ep)
    fused["dec_w"] = fuse_tcl_group(raw["dec_w"], k_pad=Ep)
    Hp = fused["enc_w"]["n_pad"]                                 # lane-padded hidden width
    fused["enc_u"] = fuse_tcl_group(raw["enc_u"], k_pad=Hp)
    fused["dec_u"] = fuse_tcl_group(raw["dec_u"], k_pad=Hp)
    fused["fc_out"] = fuse_tcl_group([raw["fc_out"]], k_pad=Hp)  # consumes padded GRU output

    X_p = jax.random.normal(keys[20], (B, T) + DATA_DIM, jnp.float32)
    X_f = jax.random.normal(keys[21], (B, T) + DATA_DIM, jnp.float32)
    noise = jax.random.normal(keys[22], (B,) + HID_DIM, jnp.float32)

    # --- standalone TCL block (the spec module) vs its f32 reference ---
    x_tcl = jax.random.normal(keys[23], (B, T) + DATA_DIM, jnp.float32)
    tcl_out = tcl_group_apply(_flat3(x_tcl), fused["fc"])[..., :fused["fc"]["n_out"]]
    tcl_out = jax.block_until_ready(tcl_out)
    tcl_exp = tcl_ref(_flat3(x_tcl), raw["fc"])
    np.testing.assert_allclose(np.asarray(tcl_out), np.asarray(tcl_exp),
                               rtol=2e-2, atol=2e-2)

    # --- full composition (feed-forward TCLs + TCL-gated GRUs) ---
    out = netg_forward(fused, X_p, X_f, noise, DATA_DIM, tcl_group_apply, gru_apply)
    out = jax.block_until_ready(out)
    ref = netg_forward(raw, X_p, X_f, noise, DATA_DIM, tcl_ref, gru_ref)
    assert out.shape == (B, T) + DATA_DIM
    # Kernel matmuls run with bf16 weights (f32 accumulate) vs an f32/HIGHEST reference, and the
    # error compounds through two 4-step recurrences, hence the 5e-2 tolerance.
    np.testing.assert_allclose(np.asarray(out), np.asarray(ref), rtol=5e-2, atol=5e-2)
    print("KERNEL_OK")
</pallas_src>

<mosaic_0001>
module attributes {stable_mosaic.version = 11 : i64} {
  func.func @tcl_group_kernel(%arg0: i32, %arg1: memref<8x32xf32, #tpu.memory_space<vmem>>, %arg2: memref<32x128xbf16, #tpu.memory_space<vmem>>, %arg3: memref<1x128xf32, #tpu.memory_space<vmem>>, %arg4: memref<1x128xf32, #tpu.memory_space<vmem>>, %arg5: memref<1x128xf32, #tpu.memory_space<vmem>>, %arg6: memref<8x128xf32, #tpu.memory_space<vmem>>) attributes {dimension_semantics = [#tpu.dimension_semantics<parallel>], iteration_bounds = array<i64: 1>, scalar_prefetch = 0 : i64, scratch_operands = 0 : i64, tpu.core_type = #tpu.core_type<tc>, window_params = [{transform_indices = @transform_0, window_bounds = array<i64: 8, 32>}, {pipeline_mode = #tpu.pipeline_mode<synchronous>, transform_indices = @transform_1, window_bounds = array<i64: 32, 128>}, {pipeline_mode = #tpu.pipeline_mode<synchronous>, transform_indices = @transform_2, window_bounds = array<i64: 1, 128>}, {pipeline_mode = #tpu.pipeline_mode<synchronous>, transform_indices = @transform_3, window_bounds = array<i64: 1, 128>}, {pipeline_mode = #tpu.pipeline_mode<synchronous>, transform_indices = @transform_4, window_bounds = array<i64: 1, 128>}, {transform_indices = @transform_5, window_bounds = array<i64: 8, 128>}]} {
    %c0 = arith.constant 0 : index
    %c0_0 = arith.constant 0 : index
    %0 = vector.load %arg1[%c0, %c0_0] : memref<8x32xf32, #tpu.memory_space<vmem>>, vector<8x32xf32>
    %cst = arith.constant dense<0.000000e+00> : vector<8xf32>
    %1 = vector.multi_reduction <add>, %0, %cst [1] : vector<8x32xf32> to vector<8xf32>
    %2 = vector.shape_cast %1 : vector<8xf32> to vector<8x1xf32>
    %cst_1 = arith.constant 3.125000e-02 : f32
    %3 = vector.broadcast %cst_1 : f32 to vector<8x1xf32>
    %4 = arith.mulf %2, %3 : vector<8x1xf32>
    %5 = arith.mulf %0, %0 : vector<8x32xf32>
    %cst_2 = arith.constant dense<0.000000e+00> : vector<8xf32>
    %6 = vector.multi_reduction <add>, %5, %cst_2 [1] : vector<8x32xf32> to vector<8xf32>
    %7 = vector.shape_cast %6 : vector<8xf32> to vector<8x1xf32>
    %cst_3 = arith.constant 3.125000e-02 : f32
    %8 = vector.broadcast %cst_3 : f32 to vector<8x1xf32>
    %9 = arith.mulf %7, %8 : vector<8x1xf32>
    %10 = arith.mulf %4, %4 : vector<8x1xf32>
    %11 = arith.subf %9, %10 : vector<8x1xf32>
    %12 = vector.broadcast %4 : vector<8x1xf32> to vector<8x32xf32>
    %13 = arith.subf %0, %12 : vector<8x32xf32>
    %cst_4 = arith.constant 9.99999974E-6 : f32
    %14 = vector.broadcast %cst_4 : f32 to vector<8x1xf32>
    %15 = arith.addf %11, %14 : vector<8x1xf32>
    %16 = math.rsqrt %15 : vector<8x1xf32>
    %17 = vector.broadcast %16 : vector<8x1xf32> to vector<8x32xf32>
    %18 = arith.mulf %13, %17 : vector<8x32xf32>
    %19 = arith.truncf %18 : vector<8x32xf32> to vector<8x32xbf16>
    %c0_5 = arith.constant 0 : index
    %c0_6 = arith.constant 0 : index
    %20 = vector.load %arg2[%c0_5, %c0_6] : memref<32x128xbf16, #tpu.memory_space<vmem>>, vector<32x128xbf16>
    %cst_7 = arith.constant dense<0.000000e+00> : vector<8x128xf32>
    %21 = tpu.matmul %19, %20, %cst_7 {dimension_numbers = #tpu.dot_dimension_numbers<[1], [0], [0], [1], [0, 0, 1, 1], [], []>} : vector<8x32xbf16>, vector<32x128xbf16>, vector<8x128xf32> -> vector<8x128xf32>
    %c0_8 = arith.constant 0 : index
    %c0_9 = arith.constant 0 : index
    %22 = vector.load %arg3[%c0_8, %c0_9] : memref<1x128xf32, #tpu.memory_space<vmem>>, vector<1x128xf32>
    %23 = vector.broadcast %22 : vector<1x128xf32> to vector<8x128xf32>
    %24 = arith.addf %21, %23 : vector<8x128xf32>
    %cst_10 = arith.constant dense<0.000000e+00> : vector<8xf32>
    %25 = vector.multi_reduction <add>, %24, %cst_10 [1] : vector<8x128xf32> to vector<8xf32>
    %26 = vector.shape_cast %25 : vector<8xf32> to vector<8x1xf32>
    %cst_11 = arith.constant 3.125000e-02 : f32
    %27 = vector.broadcast %cst_11 : f32 to vector<8x1xf32>
    %28 = arith.mulf %26, %27 : vector<8x1xf32>
    %29 = arith.mulf %24, %24 : vector<8x128xf32>
    %cst_12 = arith.constant dense<0.000000e+00> : vector<8xf32>
    %30 = vector.multi_reduction <add>, %29, %cst_12 [1] : vector<8x128xf32> to vector<8xf32>
    %31 = vector.shape_cast %30 : vector<8xf32> to vector<8x1xf32>
    %cst_13 = arith.constant 3.125000e-02 : f32
    %32 = vector.broadcast %cst_13 : f32 to vector<8x1xf32>
    %33 = arith.mulf %31, %32 : vector<8x1xf32>
    %34 = arith.mulf %28, %28 : vector<8x1xf32>
    %35 = arith.subf %33, %34 : vector<8x1xf32>
    %36 = vector.broadcast %28 : vector<8x1xf32> to vector<8x128xf32>
    %37 = arith.subf %24, %36 : vector<8x128xf32>
    %cst_14 = arith.constant 9.99999974E-6 : f32
    %38 = vector.broadcast %cst_14 : f32 to vector<8x1xf32>
    %39 = arith.addf %35, %38 : vector<8x1xf32>
    %40 = math.rsqrt %39 : vector<8x1xf32>
    %41 = vector.broadcast %40 : vector<8x1xf32> to vector<8x128xf32>
    %42 = arith.mulf %37, %41 : vector<8x128xf32>
    %c0_15 = arith.constant 0 : index
    %c0_16 = arith.constant 0 : index
    %43 = vector.load %arg4[%c0_15, %c0_16] : memref<1x128xf32, #tpu.memory_space<vmem>>, vector<1x128xf32>
    %44 = vector.broadcast %43 : vector<1x128xf32> to vector<8x128xf32>
    %45 = arith.mulf %42, %44 : vector<8x128xf32>
    %c0_17 = arith.constant 0 : index
    %c0_18 = arith.constant 0 : index
    %46 = vector.load %arg5[%c0_17, %c0_18] : memref<1x128xf32, #tpu.memory_space<vmem>>, vector<1x128xf32>
    %47 = vector.broadcast %46 : vector<1x128xf32> to vector<8x128xf32>
    %48 = arith.addf %45, %47 : vector<8x128xf32>
    %c0_19 = arith.constant 0 : index
    %c0_20 = arith.constant 0 : index
    %49 = vector.load %arg6[%c0_19, %c0_20] : memref<8x128xf32, #tpu.memory_space<vmem>>, vector<8x128xf32>
    tpu.vector_store %arg6[%c0_19, %c0_20], %48 {strides = array<i32>} : memref<8x128xf32, #tpu.memory_space<vmem>>, vector<8x128xf32>,
    return
  }
  func.func @transform_0(%arg0: i32) -> (i32, i32) {
    %c0_i32 = arith.constant 0 : i32
    %c0_i32_0 = arith.constant 0 : i32
    return %arg0, %c0_i32 : i32, i32
  }
  func.func @transform_1(%arg0: i32) -> (i32, i32) {
    %c0_i32 = arith.constant 0 : i32
    %c0_i32_0 = arith.constant 0 : i32
    %c0_i32_1 = arith.constant 0 : i32
    return %c0_i32, %c0_i32_0 : i32, i32
  }
  func.func @transform_2(%arg0: i32) -> (i32, i32) {
    %c0_i32 = arith.constant 0 : i32
    %c0_i32_0 = arith.constant 0 : i32
    %c0_i32_1 = arith.constant 0 : i32
    return %c0_i32, %c0_i32_0 : i32, i32
  }
  func.func @transform_3(%arg0: i32) -> (i32, i32) {
    %c0_i32 = arith.constant 0 : i32
    %c0_i32_0 = arith.constant 0 : i32
    %c0_i32_1 = arith.constant 0 : i32
    return %c0_i32, %c0_i32_0 : i32, i32
  }
  func.func @transform_4(%arg0: i32) -> (i32, i32) {
    %c0_i32 = arith.constant 0 : i32
    %c0_i32_0 = arith.constant 0 : i32
    %c0_i32_1 = arith.constant 0 : i32
    return %c0_i32, %c0_i32_0 : i32, i32
  }
  func.func @transform_5(%arg0: i32) -> (i32, i32) {
    %c0_i32 = arith.constant 0 : i32
    %c0_i32_0 = arith.constant 0 : i32
    return %arg0, %c0_i32 : i32, i32
  }
}

</mosaic_0001>

<llo_original>
// kernel: tpu_custom_call.1
$region0: #{tpu_custom_call.1}
  #allocation0 [shape = 'u32[]', space=smem, size = 0x4, offset = 0x4, fixed_abs, tag = 'smem constant byte address 0x4 - core index']
  #allocation1 [shape = 'u32[144,128]{1,0:T(1,128)}', space=vmem, size = 0x12000, scoped, tag = 'internal scratch']
  %s0 = inlined_call_operand.hbm [shape: f32[8,32], index: 0, kind: input, shape index: {}]
  %s1 = inlined_call_operand.hbm [shape: bf16[32,128], index: 1, kind: input, shape index: {}]
  %s2 = inlined_call_operand.vmem [shape: f32[1,128], index: 2, kind: input, shape index: {}]
  %s3 = inlined_call_operand.vmem [shape: f32[1,128], index: 3, kind: input, shape index: {}]
  %s4 = inlined_call_operand.vmem [shape: f32[1,128], index: 4, kind: input, shape index: {}]
  %s5 = inlined_call_operand.hbm [shape: f32[8,128], index: 5, kind: output, shape index: {}]
  %s6 = sld [smem:[#allocation0]]
  $region38: #{tpu_custom_call.1} parent=0
    _
  %s8 = ssub.s32 1, %s6
  %s9 = scalar_select 0, %s8, %s6
  $region1: #{tpu_custom_call.1} parent=0
    #allocation2 [shape = 'u8[4096]{0}', space=vmem, size = 0x1000, scoped, tag = 'input window, operand 0, single buffered']
    #allocation3 [shape = 's32[1]{0}', space=sflag, size = 0x4, scoped, tag = 'scoped memory for tpu_custom_call.1']
    #allocation4 [shape = 's32[1]{0}', space=sflag, size = 0x4, scoped, tag = 'scoped memory for tpu_custom_call.1']
    #allocation5 [shape = 'u8[8192]{0}', space=vmem, size = 0x2000, scoped, tag = 'input window, operand 1, single buffered']
    #allocation6 [shape = 's32[1]{0}', space=sflag, size = 0x4, scoped, tag = 'scoped memory for tpu_custom_call.1']
    #allocation7 [shape = 'u8[4096]{0}', space=vmem, size = 0x1000, scoped, tag = 'output window, operand 0, single buffered']
    %10 = vsyncpa [#allocation3], 0
    %11 = vsyncpa [#allocation6], 0
    %12 = vsyncpa [#allocation4], 0
    // Predicated region
    $region2: #{tpu_custom_call.1} parent=1 // pred_check
      _
    $region3: #{tpu_custom_call.1} parent=1 // pred_check_branch
      %14 = sbr.rel (0) target = $region5
    $region4: #{tpu_custom_call.1} parent=1 // pred_region
      %s16 = ssub.s32 128, 128
      %17 = vsyncadd [#allocation3], %s16
      %s19 = sshll.u32 [#allocation2], 4
      %s20 = int_to_ptr.vmem [resolvable:$true] %s19
      %22 = dma.hbm_to_vmem [thread:$0]  %s0, 128, %s20, [#allocation3]
    $region5: #{tpu_custom_call.1} parent=1 // pred_fallthru
      _
    // Predicated region
    $region6: #{tpu_custom_call.1} parent=1 // pred_check
      _
    $region7: #{tpu_custom_call.1} parent=1 // pred_check_branch
      %24 = sbr.rel (0) target = $region9
    $region8: #{tpu_custom_call.1} parent=1 // pred_region
      %s26 = ssub.s32 256, 256
      %27 = vsyncadd [#allocation6], %s26
      %s28 = sshll.u32 [#allocation5], 4
      %s29 = int_to_ptr.vmem [resolvable:$true] %s28
      %34 = dma.hbm_to_vmem [thread:$0]  %s1, 256, %s29, [#allocation6], 64, 64, 4
    $region9: #{tpu_custom_call.1} parent=1 // pred_fallthru
      _
    // Predicated region
    $region10: #{tpu_custom_call.1} parent=1 // pred_check
      _
    $region11: #{tpu_custom_call.1} parent=1 // pred_check_branch
      %36 = sbr.rel (0) target = $region13
    $region12: #{tpu_custom_call.1} parent=1 // pred_region
      _
    $region13: #{tpu_custom_call.1} parent=1 // pred_fallthru
      _
    // Predicated region
    $region14: #{tpu_custom_call.1} parent=1 // pred_check
      _
    $region15: #{tpu_custom_call.1} parent=1 // pred_check_branch
      %38 = sbr.rel (0) target = $region17
    $region16: #{tpu_custom_call.1} parent=1 // pred_region
      _
    $region17: #{tpu_custom_call.1} parent=1 // pred_fallthru
      _
    // Predicated region
    $region18: #{tpu_custom_call.1} parent=1 // pred_check
      _
    $region19: #{tpu_custom_call.1} parent=1 // pred_check_branch
      %40 = sbr.rel (0) target = $region21
    $region20: #{tpu_custom_call.1} parent=1 // pred_region
      _
    $region21: #{tpu_custom_call.1} parent=1 // pred_fallthru
      _
    // Predicated region
    $region22: #{tpu_custom_call.1} parent=1 // pred_check
      _
    $region23: #{tpu_custom_call.1} parent=1 // pred_check_branch
      %42 = sbr.rel (0) target = $region25
    $region24: #{tpu_custom_call.1} parent=1 // pred_region
      %43 = dma.done [#allocation3], 128
    $region25: #{tpu_custom_call.1} parent=1 // pred_fallthru
      _
    // Predicated region
    $region26: #{tpu_custom_call.1} parent=1 // pred_check
      _
    $region27: #{tpu_custom_call.1} parent=1 // pred_check_branch
      %45 = sbr.rel (0) target = $region29
    $region28: #{tpu_custom_call.1} parent=1 // pred_region
      %46 = dma.done [#allocation6], 256
    $region29: #{tpu_custom_call.1} parent=1 // pred_fallthru
      _
    %v48 = vld [vmem:[#allocation2] sm:$0xff]
    %vm49 = vcmask 261120
    %v50 = vsel %vm49, %v48, 0.0
    %51 = vadd.xlane.f32.xlu0 %v50
    %v52 = vpop.xlane.xlu0 %51
    %v53 = vmul.f32 %v52, 0.03125
    %v54 = vmul.f32 %v48, %v48
    %v55 = vsel %vm49, %v54, 0.0
    %56 = vadd.xlane.f32.xlu0 %v55
    %v57 = vpop.xlane.xlu0 %56
    %v58 = vmul.f32 %v57, 0.03125
    %v59 = vmul.f32 %v53, %v53
    %v60 = vsub.f32 %v58, %v59
    %v61 = vsub.f32 %v48, %v53
    %v62 = vadd.f32 %v60, 1e-05
    %v63 = vrsqrt.pop %v62
    %v64 = vmul.f32 %v61, %v63
    %v65 = vpack.c.bf16 %v64, %v64
    %v66 = vld [vmem:[#allocation5] sm:$0xf]
    %v67 = vld [vmem:[#allocation5 + $0x4] sm:$0xf]
    %v68 = vld [vmem:[#allocation5 + $0x8] sm:$0xf]
    %v69 = vld [vmem:[#allocation5 + $0xc] sm:$0xf]
    %v70 = vld [vmem:[%s2] sm:$0x1]
    %v72 = vlaneseq
    %v73 = vshrl.u32 %v72, 7
    %v74 = vsub.s32 0, %v73
    %v75 = vrot.slane %v70, %v74
    %v81 = vunpack.c.l.b16 %v66
    %v82 = vunpack.c.l.b16 %v67
    %v83 = vunpack.c.l.b16 %v68
    %v84 = vunpack.c.l.b16 %v69
    %v85 = vpack.c.b16 %v82, %v81
    %v86 = vpack.c.b16 %v84, %v83
    %v90 = vsel %vm49, %v65, 0
    %92 = vmatprep.subr.bf16.mxu0 0
    %93 = vmatpush1.bf16.msra.mxu0 %v85
    %94 = vmatprep.subr.bf16.mxu0 0
    %95 = vmatpush1.bf16.msra.mxu0 %v86
    %96 = vmatprep.subr.bf16.mxu0 0
    %97 = vmatpush1.bf16.msra.mxu0 0
    %98 = vmatprep.subr.bf16.mxu0 0
    %99 = vmatpush1.bf16.msra.mxu0 0
    %100 = vmatprep.subr.bf16.mxu0 0
    %101 = vmatpush1.bf16.msra.mxu0 0
    %102 = vmatprep.subr.bf16.mxu0 0
    %103 = vmatpush1.bf16.msra.mxu0 0
    %104 = vmatprep.subr.bf16.mxu0 0
    %105 = vmatpush1.bf16.msra.mxu0 0
    %106 = vmatprep.subr.bf16.mxu0 0
    %107 = vmatpush1.bf16.msra.mxu0 0
    %108 = vmatprep.subr.bf16.mxu0 0
    %109 = vmatpush1.bf16.msra.mxu0 0
    %110 = vmatprep.subr.bf16.mxu0 0
    %111 = vmatpush1.bf16.msra.mxu0 0
    %112 = vmatprep.subr.bf16.mxu0 0
    %113 = vmatpush1.bf16.msra.mxu0 0
    %114 = vmatprep.subr.bf16.mxu0 0
    %115 = vmatpush1.bf16.msra.mxu0 0
    %116 = vmatprep.subr.bf16.mxu0 0
    %117 = vmatpush1.bf16.msra.mxu0 0
    %118 = vmatprep.subr.bf16.mxu0 0
    %119 = vmatpush1.bf16.msra.mxu0 0
    %120 = vmatprep.subr.bf16.mxu0 0
    %121 = vmatpush1.bf16.msra.mxu0 0
    %122 = vmatprep.subr.bf16.mxu0 0
    %123 = vmatpush1.bf16.msra.mxu0 0
    %124 = vmatprep.mubr.bf16.mxu0 0
    %125 = vmatmul.mubr.bf16.gmra.mrb[0].mxu0 %v90
    %v126 = vpop.f32.mrb[0].mxu0
    %v127 = vadd.f32 %v75, %v126
    %v128 = vpop.f32.mrb[0].mxu0
    %v129 = vpop.f32.mrb[0].mxu0
    %v130 = vpop.f32.mrb[0].mxu0
    %131 = vdwg.mxu0
    %132 = vadd.xlane.f32.xlu0 %v127
    %v133 = vpop.xlane.xlu0 %132
    %v134 = vmul.f32 %v133, 0.03125
    %v135 = vmul.f32 %v127, %v127
    %136 = vadd.xlane.f32.xlu0 %v135
    %v137 = vpop.xlane.xlu0 %136
    %v138 = vmul.f32 %v137, 0.03125
    %v139 = vmul.f32 %v134, %v134
    %v140 = vsub.f32 %v138, %v139
    %v141 = vsub.f32 %v127, %v134
    %v142 = vadd.f32 %v140, 1e-05
    %v143 = vrsqrt.pop %v142
    %v144 = vmul.f32 %v141, %v143
    %v145 = vld [vmem:[%s3] sm:$0x1]
    %v147 = vlaneseq
    %v148 = vshrl.u32 %v147, 7
    %v149 = vsub.s32 0, %v148
    %v150 = vrot.slane %v145, %v149
    %v152 = vmul.f32 %v144, %v150
    %v153 = vld [vmem:[%s4] sm:$0x1]
    %v155 = vlaneseq
    %v156 = vshrl.u32 %v155, 7
    %v157 = vsub.s32 0, %v156
    %v158 = vrot.slane %v153, %v157
    %v160 = vadd.f32 %v152, %v158
    %161 = vst [vmem:[#allocation7] sm:$0xff] %v160
    // Predicated region
    $region30: #{tpu_custom_call.1} parent=1 // pred_check
      _
    $region31: #{tpu_custom_call.1} parent=1 // pred_check_branch
      %163 = sbr.rel (0) target = $region33
    $region32: #{tpu_custom_call.1} parent=1 // pred_region
      %s165 = ssub.s32 128, 128
      %166 = vsyncadd [#allocation4], %s165
      %s168 = sshll.u32 [#allocation7], 4
      %s169 = int_to_ptr.vmem [resolvable:$true] %s168
      %171 = dma.vmem_to_hbm [thread:$0]  %s169, 128, %s5, [#allocation4]
    $region33: #{tpu_custom_call.1} parent=1 // pred_fallthru
      _
    // Predicated region
    $region34: #{tpu_custom_call.1} parent=1 // pred_check
      _
    $region35: #{tpu_custom_call.1} parent=1 // pred_check_branch
      %173 = sbr.rel (0) target = $region37
    $region36: #{tpu_custom_call.1} parent=1 // pred_region
      %174 = dma.done [#allocation4], 128
    $region37: #{tpu_custom_call.1} parent=1 // pred_fallthru
      _
    %175 = vsyncpa [#allocation3], 1
    %176 = vsyncpa [#allocation6], 1
    %177 = vsyncpa [#allocation4], 1

</llo_original>
